<compile_context>
chip_gen: v7x
topology: tpu7x:2x2x1
jax: 0.10.0
libtpu: 0.0.40
codegen_flags: <defaults>
</compile_context>

<pallas_src>
import jax
import jax.numpy as jnp
from jax.experimental import pallas as pl
from jax.experimental.pallas import tpu as pltpu

NUM_CLASSES = 6
LANE = 128       # lane-dense padded width of the output head
SUBLANE = 8      # sublane-dense padded batch rows of the output slab


def rnn_kernel(ids_ref, proj_ref, whh_ref, wout_ref, bout_ref, out_ref):
    """Fused gather + unrolled tanh recurrence + lane/sublane-dense head.

    ids_ref  : SMEM (B, S)    int32  -- token ids
    proj_ref : VMEM (V, 1, H) f32    -- embedding @ W_ih^T + (b_ih + b_hh), precomputed
    whh_ref  : VMEM (H, H)    bf16   -- W_hh^T
    wout_ref : VMEM (H, 128)  bf16   -- W_out^T zero-padded to 128 lanes
    bout_ref : VMEM (1, 128)  f32    -- b_out zero-padded to 128 lanes
    out_ref  : VMEM (B_pad, 128) f32 -- full unmasked output tile
    """
    B, S = ids_ref.shape
    H = whh_ref.shape[0]
    B_pad = out_ref.shape[0]

    # In-kernel embedding gather (rows already projected + biased).  Dynamic index along
    # the untiled leading axis of the (V, 1, H) table; padded batch slots get zeros.
    pad_row = jnp.zeros((1, H), jnp.float32)           # hoisted, reused every step
    xp = []
    for t in range(S):
        rows = [proj_ref[ids_ref[b, t]] for b in range(B)]      # each (1, H)
        rows += [pad_row] * (B_pad - B)
        xp.append(jnp.concatenate(rows, axis=0))                # (B_pad, H)

    # Serial recurrence, h0 = 0 (PyTorch nn.RNN default).  bf16 MXU operands with f32
    # accumulation; the add + tanh remain f32 on the VPU/EUP.
    # TODO(synk): for larger H, keep W_hh resident via pltpu.matmul_push_rhs/acc_lhs/pop.
    w_hh = whh_ref[...]
    h = jnp.zeros((B_pad, H), jnp.float32)
    for t in range(S):
        h = jnp.tanh(xp[t] + jnp.dot(h.astype(jnp.bfloat16), w_hh,
                                     preferred_element_type=jnp.float32))

    # Head: (B_pad, H) @ (H, 128) + (1, 128) -> full (8, 128) unmasked store.
    out_ref[...] = (jnp.dot(h.astype(jnp.bfloat16), wout_ref[...],
                            preferred_element_type=jnp.float32)
                    + bout_ref[...]).astype(out_ref.dtype)


def rnn_forward_pallas(char_ids, fast):
    """char_ids: (B, S) int32.  Returns logits (B, NUM_CLASSES) f32."""
    B, S = char_ids.shape
    B_pad = ((B + SUBLANE - 1) // SUBLANE) * SUBLANE
    smem = pl.BlockSpec(memory_space=pltpu.MemorySpace.SMEM)
    vmem = pl.BlockSpec(memory_space=pltpu.MemorySpace.VMEM)
    out_padded = pl.pallas_call(
        rnn_kernel,
        out_shape=jax.ShapeDtypeStruct((B_pad, LANE), jnp.float32),
        in_specs=[smem, vmem, vmem, vmem, vmem],
        out_specs=vmem,
    )(char_ids, fast["emb_proj"], fast["w_hh_t"], fast["w_out_t_pad"], fast["b_out_pad"])
    return out_padded[:B, :NUM_CLASSES]


def prepare_fast_params(params):
    """One-time, off-the-hot-path parameter prep (exact algebraic folds + layout prep)."""
    H = params["w_hh"].shape[0]
    # Fold input projection + both RNN biases into the embedding table (exact per-row).
    emb_proj = (params["embedding"] @ params["w_ih"].T
                + params["b_ih"] + params["b_hh"])               # (V, H) f32
    w_out_t_pad = (jnp.zeros((H, LANE), jnp.bfloat16)
                   .at[:, :NUM_CLASSES].set(params["w_out"].T.astype(jnp.bfloat16)))
    b_out_pad = (jnp.zeros((1, LANE), jnp.float32)
                 .at[:, :NUM_CLASSES].set(params["b_out"]))
    return {
        "emb_proj": emb_proj[:, None, :],                        # (V, 1, H) f32
        "w_hh_t": params["w_hh"].T.astype(jnp.bfloat16),         # (H, H)  bf16
        "w_out_t_pad": w_out_t_pad,                              # (H, 128) bf16
        "b_out_pad": b_out_pad,                                  # (1, 128) f32
    }


def torch_rnn_forward(char_ids, fast_params, label=None):
    """Mirrors TorchRNN.forward: logits if label is None, else mean CE loss."""
    logits = rnn_forward_pallas(char_ids, fast_params)
    if label is not None:
        # glue: cross-entropy (mean reduction, same as F.cross_entropy) in plain JAX
        logp = jax.nn.log_softmax(logits, axis=-1)
        return -jnp.mean(jnp.take_along_axis(logp, label[:, None], axis=-1))
    return logits


def reference_forward(char_ids, params):
    """Pure-JAX f32 reference (nn.RNN semantics) for the correctness check."""
    x = jnp.take(params["embedding"], char_ids, axis=0)          # (B, S, D)
    B, S, D = x.shape
    H = params["w_hh"].shape[0]
    h = jnp.zeros((B, H), jnp.float32)
    for t in range(S):
        h = jnp.tanh(x[:, t, :] @ params["w_ih"].T + params["b_ih"]
                     + h @ params["w_hh"].T + params["b_hh"])
    return h @ params["w_out"].T + params["b_out"]


def init_params(key, vocab, char_dim, hidden):
    """Deterministic synthetic parameters matching the PyTorch module shapes."""
    ks = jax.random.split(key, 7)
    b_rnn = 1.0 / jnp.sqrt(hidden)
    u = lambda k, shape, b: jax.random.uniform(k, shape, jnp.float32, -b, b)
    return {
        "embedding": jax.random.normal(ks[0], (vocab, char_dim), jnp.float32),
        "w_ih": u(ks[1], (hidden, char_dim), b_rnn),
        "w_hh": u(ks[2], (hidden, hidden), b_rnn),
        "b_ih": u(ks[3], (hidden,), b_rnn),
        "b_hh": u(ks[4], (hidden,), b_rnn),
        "w_out": u(ks[5], (NUM_CLASSES, hidden), b_rnn),
        "b_out": u(ks[6], (NUM_CLASSES,), b_rnn),
    }


if __name__ == "__main__":
    B, S = 2, 8                 # batch, sequence length
    vocab, char_dim, hidden = 30, 32, 32
    key = jax.random.PRNGKey(0)
    kp, kx, kl = jax.random.split(key, 3)
    params = init_params(kp, vocab, char_dim, hidden)
    fast_params = prepare_fast_params(params)       # once, off the per-call path
    char_ids = jax.random.randint(kx, (B, S), 0, vocab, dtype=jnp.int32)

    logits = torch_rnn_forward(char_ids, fast_params)           # label=None path
    jax.block_until_ready(logits)
    assert logits.shape == (B, NUM_CLASSES)

    # Correctness vs pure-f32 JAX reference.  Tolerance is loosened because the kernel
    # feeds bf16 operands to the MXU (per perf review); error compounds over 8 tanh steps.
    ref = reference_forward(char_ids, params)
    assert jnp.allclose(logits, ref, atol=5e-2, rtol=5e-2), (logits, ref)

    labels = jax.random.randint(kl, (B,), 0, NUM_CLASSES, dtype=jnp.int32)
    loss = torch_rnn_forward(char_ids, fast_params, labels)     # loss path (glue CE)
    jax.block_until_ready(loss)
    assert loss.shape == ()

    print("KERNEL_OK")
</pallas_src>

<mosaic_0001>
module attributes {stable_mosaic.version = 11 : i64} {
  func.func @rnn_kernel(%arg0: memref<2x8xi32, #tpu.memory_space<smem>>, %arg1: memref<30x1x32xf32, #tpu.memory_space<vmem>>, %arg2: memref<32x32xbf16, #tpu.memory_space<vmem>>, %arg3: memref<32x128xbf16, #tpu.memory_space<vmem>>, %arg4: memref<1x128xf32, #tpu.memory_space<vmem>>, %arg5: memref<8x128xf32, #tpu.memory_space<vmem>>) attributes {dimension_semantics = [], scalar_prefetch = 0 : i64, scratch_operands = 0 : i64, tpu.core_type = #tpu.core_type<tc>} {
    %cst = arith.constant 0.000000e+00 : f32
    %0 = vector.broadcast %cst : f32 to vector<1x32xf32>
    %c0 = arith.constant 0 : index
    %c0_0 = arith.constant 0 : index
    %1 = memref.load %arg0[%c0, %c0_0] : memref<2x8xi32, #tpu.memory_space<smem>>
    %2 = arith.index_cast %1 : i32 to index
    %c0_1 = arith.constant 0 : index
    %c0_2 = arith.constant 0 : index
    %3 = vector.load %arg1[%2, %c0_1, %c0_2] : memref<30x1x32xf32, #tpu.memory_space<vmem>>, vector<1x1x32xf32>
    %4 = vector.shape_cast %3 : vector<1x1x32xf32> to vector<1x32xf32>
    %c1 = arith.constant 1 : index
    %c0_3 = arith.constant 0 : index
    %5 = memref.load %arg0[%c1, %c0_3] : memref<2x8xi32, #tpu.memory_space<smem>>
    %6 = arith.index_cast %5 : i32 to index
    %c0_4 = arith.constant 0 : index
    %c0_5 = arith.constant 0 : index
    %7 = vector.load %arg1[%6, %c0_4, %c0_5] : memref<30x1x32xf32, #tpu.memory_space<vmem>>, vector<1x1x32xf32>
    %8 = vector.shape_cast %7 : vector<1x1x32xf32> to vector<1x32xf32>
    %9 = tpu.concatenate %4, %8, %0, %0, %0, %0, %0, %0 in 0 : vector<1x32xf32>, vector<1x32xf32>, vector<1x32xf32>, vector<1x32xf32>, vector<1x32xf32>, vector<1x32xf32>, vector<1x32xf32>, vector<1x32xf32> -> vector<8x32xf32>
    %c0_6 = arith.constant 0 : index
    %c1_7 = arith.constant 1 : index
    %10 = memref.load %arg0[%c0_6, %c1_7] : memref<2x8xi32, #tpu.memory_space<smem>>
    %11 = arith.index_cast %10 : i32 to index
    %c0_8 = arith.constant 0 : index
    %c0_9 = arith.constant 0 : index
    %12 = vector.load %arg1[%11, %c0_8, %c0_9] : memref<30x1x32xf32, #tpu.memory_space<vmem>>, vector<1x1x32xf32>
    %13 = vector.shape_cast %12 : vector<1x1x32xf32> to vector<1x32xf32>
    %c1_10 = arith.constant 1 : index
    %c1_11 = arith.constant 1 : index
    %14 = memref.load %arg0[%c1_10, %c1_11] : memref<2x8xi32, #tpu.memory_space<smem>>
    %15 = arith.index_cast %14 : i32 to index
    %c0_12 = arith.constant 0 : index
    %c0_13 = arith.constant 0 : index
    %16 = vector.load %arg1[%15, %c0_12, %c0_13] : memref<30x1x32xf32, #tpu.memory_space<vmem>>, vector<1x1x32xf32>
    %17 = vector.shape_cast %16 : vector<1x1x32xf32> to vector<1x32xf32>
    %18 = tpu.concatenate %13, %17, %0, %0, %0, %0, %0, %0 in 0 : vector<1x32xf32>, vector<1x32xf32>, vector<1x32xf32>, vector<1x32xf32>, vector<1x32xf32>, vector<1x32xf32>, vector<1x32xf32>, vector<1x32xf32> -> vector<8x32xf32>
    %c0_14 = arith.constant 0 : index
    %c2 = arith.constant 2 : index
    %19 = memref.load %arg0[%c0_14, %c2] : memref<2x8xi32, #tpu.memory_space<smem>>
    %20 = arith.index_cast %19 : i32 to index
    %c0_15 = arith.constant 0 : index
    %c0_16 = arith.constant 0 : index
    %21 = vector.load %arg1[%20, %c0_15, %c0_16] : memref<30x1x32xf32, #tpu.memory_space<vmem>>, vector<1x1x32xf32>
    %22 = vector.shape_cast %21 : vector<1x1x32xf32> to vector<1x32xf32>
    %c1_17 = arith.constant 1 : index
    %c2_18 = arith.constant 2 : index
    %23 = memref.load %arg0[%c1_17, %c2_18] : memref<2x8xi32, #tpu.memory_space<smem>>
    %24 = arith.index_cast %23 : i32 to index
    %c0_19 = arith.constant 0 : index
    %c0_20 = arith.constant 0 : index
    %25 = vector.load %arg1[%24, %c0_19, %c0_20] : memref<30x1x32xf32, #tpu.memory_space<vmem>>, vector<1x1x32xf32>
    %26 = vector.shape_cast %25 : vector<1x1x32xf32> to vector<1x32xf32>
    %27 = tpu.concatenate %22, %26, %0, %0, %0, %0, %0, %0 in 0 : vector<1x32xf32>, vector<1x32xf32>, vector<1x32xf32>, vector<1x32xf32>, vector<1x32xf32>, vector<1x32xf32>, vector<1x32xf32>, vector<1x32xf32> -> vector<8x32xf32>
    %c0_21 = arith.constant 0 : index
    %c3 = arith.constant 3 : index
    %28 = memref.load %arg0[%c0_21, %c3] : memref<2x8xi32, #tpu.memory_space<smem>>
    %29 = arith.index_cast %28 : i32 to index
    %c0_22 = arith.constant 0 : index
    %c0_23 = arith.constant 0 : index
    %30 = vector.load %arg1[%29, %c0_22, %c0_23] : memref<30x1x32xf32, #tpu.memory_space<vmem>>, vector<1x1x32xf32>
    %31 = vector.shape_cast %30 : vector<1x1x32xf32> to vector<1x32xf32>
    %c1_24 = arith.constant 1 : index
    %c3_25 = arith.constant 3 : index
    %32 = memref.load %arg0[%c1_24, %c3_25] : memref<2x8xi32, #tpu.memory_space<smem>>
    %33 = arith.index_cast %32 : i32 to index
    %c0_26 = arith.constant 0 : index
    %c0_27 = arith.constant 0 : index
    %34 = vector.load %arg1[%33, %c0_26, %c0_27] : memref<30x1x32xf32, #tpu.memory_space<vmem>>, vector<1x1x32xf32>
    %35 = vector.shape_cast %34 : vector<1x1x32xf32> to vector<1x32xf32>
    %36 = tpu.concatenate %31, %35, %0, %0, %0, %0, %0, %0 in 0 : vector<1x32xf32>, vector<1x32xf32>, vector<1x32xf32>, vector<1x32xf32>, vector<1x32xf32>, vector<1x32xf32>, vector<1x32xf32>, vector<1x32xf32> -> vector<8x32xf32>
    %c0_28 = arith.constant 0 : index
    %c4 = arith.constant 4 : index
    %37 = memref.load %arg0[%c0_28, %c4] : memref<2x8xi32, #tpu.memory_space<smem>>
    %38 = arith.index_cast %37 : i32 to index
    %c0_29 = arith.constant 0 : index
    %c0_30 = arith.constant 0 : index
    %39 = vector.load %arg1[%38, %c0_29, %c0_30] : memref<30x1x32xf32, #tpu.memory_space<vmem>>, vector<1x1x32xf32>
    %40 = vector.shape_cast %39 : vector<1x1x32xf32> to vector<1x32xf32>
    %c1_31 = arith.constant 1 : index
    %c4_32 = arith.constant 4 : index
    %41 = memref.load %arg0[%c1_31, %c4_32] : memref<2x8xi32, #tpu.memory_space<smem>>
    %42 = arith.index_cast %41 : i32 to index
    %c0_33 = arith.constant 0 : index
    %c0_34 = arith.constant 0 : index
    %43 = vector.load %arg1[%42, %c0_33, %c0_34] : memref<30x1x32xf32, #tpu.memory_space<vmem>>, vector<1x1x32xf32>
    %44 = vector.shape_cast %43 : vector<1x1x32xf32> to vector<1x32xf32>
    %45 = tpu.concatenate %40, %44, %0, %0, %0, %0, %0, %0 in 0 : vector<1x32xf32>, vector<1x32xf32>, vector<1x32xf32>, vector<1x32xf32>, vector<1x32xf32>, vector<1x32xf32>, vector<1x32xf32>, vector<1x32xf32> -> vector<8x32xf32>
    %c0_35 = arith.constant 0 : index
    %c5 = arith.constant 5 : index
    %46 = memref.load %arg0[%c0_35, %c5] : memref<2x8xi32, #tpu.memory_space<smem>>
    %47 = arith.index_cast %46 : i32 to index
    %c0_36 = arith.constant 0 : index
    %c0_37 = arith.constant 0 : index
    %48 = vector.load %arg1[%47, %c0_36, %c0_37] : memref<30x1x32xf32, #tpu.memory_space<vmem>>, vector<1x1x32xf32>
    %49 = vector.shape_cast %48 : vector<1x1x32xf32> to vector<1x32xf32>
    %c1_38 = arith.constant 1 : index
    %c5_39 = arith.constant 5 : index
    %50 = memref.load %arg0[%c1_38, %c5_39] : memref<2x8xi32, #tpu.memory_space<smem>>
    %51 = arith.index_cast %50 : i32 to index
    %c0_40 = arith.constant 0 : index
    %c0_41 = arith.constant 0 : index
    %52 = vector.load %arg1[%51, %c0_40, %c0_41] : memref<30x1x32xf32, #tpu.memory_space<vmem>>, vector<1x1x32xf32>
    %53 = vector.shape_cast %52 : vector<1x1x32xf32> to vector<1x32xf32>
    %54 = tpu.concatenate %49, %53, %0, %0, %0, %0, %0, %0 in 0 : vector<1x32xf32>, vector<1x32xf32>, vector<1x32xf32>, vector<1x32xf32>, vector<1x32xf32>, vector<1x32xf32>, vector<1x32xf32>, vector<1x32xf32> -> vector<8x32xf32>
    %c0_42 = arith.constant 0 : index
    %c6 = arith.constant 6 : index
    %55 = memref.load %arg0[%c0_42, %c6] : memref<2x8xi32, #tpu.memory_space<smem>>
    %56 = arith.index_cast %55 : i32 to index
    %c0_43 = arith.constant 0 : index
    %c0_44 = arith.constant 0 : index
    %57 = vector.load %arg1[%56, %c0_43, %c0_44] : memref<30x1x32xf32, #tpu.memory_space<vmem>>, vector<1x1x32xf32>
    %58 = vector.shape_cast %57 : vector<1x1x32xf32> to vector<1x32xf32>
    %c1_45 = arith.constant 1 : index
    %c6_46 = arith.constant 6 : index
    %59 = memref.load %arg0[%c1_45, %c6_46] : memref<2x8xi32, #tpu.memory_space<smem>>
    %60 = arith.index_cast %59 : i32 to index
    %c0_47 = arith.constant 0 : index
    %c0_48 = arith.constant 0 : index
    %61 = vector.load %arg1[%60, %c0_47, %c0_48] : memref<30x1x32xf32, #tpu.memory_space<vmem>>, vector<1x1x32xf32>
    %62 = vector.shape_cast %61 : vector<1x1x32xf32> to vector<1x32xf32>
    %63 = tpu.concatenate %58, %62, %0, %0, %0, %0, %0, %0 in 0 : vector<1x32xf32>, vector<1x32xf32>, vector<1x32xf32>, vector<1x32xf32>, vector<1x32xf32>, vector<1x32xf32>, vector<1x32xf32>, vector<1x32xf32> -> vector<8x32xf32>
    %c0_49 = arith.constant 0 : index
    %c7 = arith.constant 7 : index
    %64 = memref.load %arg0[%c0_49, %c7] : memref<2x8xi32, #tpu.memory_space<smem>>
    %65 = arith.index_cast %64 : i32 to index
    %c0_50 = arith.constant 0 : index
    %c0_51 = arith.constant 0 : index
    %66 = vector.load %arg1[%65, %c0_50, %c0_51] : memref<30x1x32xf32, #tpu.memory_space<vmem>>, vector<1x1x32xf32>
    %67 = vector.shape_cast %66 : vector<1x1x32xf32> to vector<1x32xf32>
    %c1_52 = arith.constant 1 : index
    %c7_53 = arith.constant 7 : index
    %68 = memref.load %arg0[%c1_52, %c7_53] : memref<2x8xi32, #tpu.memory_space<smem>>
    %69 = arith.index_cast %68 : i32 to index
    %c0_54 = arith.constant 0 : index
    %c0_55 = arith.constant 0 : index
    %70 = vector.load %arg1[%69, %c0_54, %c0_55] : memref<30x1x32xf32, #tpu.memory_space<vmem>>, vector<1x1x32xf32>
    %71 = vector.shape_cast %70 : vector<1x1x32xf32> to vector<1x32xf32>
    %72 = tpu.concatenate %67, %71, %0, %0, %0, %0, %0, %0 in 0 : vector<1x32xf32>, vector<1x32xf32>, vector<1x32xf32>, vector<1x32xf32>, vector<1x32xf32>, vector<1x32xf32>, vector<1x32xf32>, vector<1x32xf32> -> vector<8x32xf32>
    %c0_56 = arith.constant 0 : index
    %c0_57 = arith.constant 0 : index
    %73 = vector.load %arg2[%c0_56, %c0_57] : memref<32x32xbf16, #tpu.memory_space<vmem>>, vector<32x32xbf16>
    %cst_58 = arith.constant 0.000000e+00 : f32
    %74 = vector.broadcast %cst_58 : f32 to vector<8x32xf32>
    %75 = arith.truncf %74 : vector<8x32xf32> to vector<8x32xbf16>
    %cst_59 = arith.constant dense<0.000000e+00> : vector<8x32xf32>
    %76 = tpu.matmul %75, %73, %cst_59 {dimension_numbers = #tpu.dot_dimension_numbers<[1], [0], [0], [1], [0, 0, 1, 1], [], []>} : vector<8x32xbf16>, vector<32x32xbf16>, vector<8x32xf32> -> vector<8x32xf32>
    %77 = arith.addf %9, %76 : vector<8x32xf32>
    %78 = math.tanh %77 : vector<8x32xf32>
    %79 = arith.truncf %78 : vector<8x32xf32> to vector<8x32xbf16>
    %cst_60 = arith.constant dense<0.000000e+00> : vector<8x32xf32>
    %80 = tpu.matmul %79, %73, %cst_60 {dimension_numbers = #tpu.dot_dimension_numbers<[1], [0], [0], [1], [0, 0, 1, 1], [], []>} : vector<8x32xbf16>, vector<32x32xbf16>, vector<8x32xf32> -> vector<8x32xf32>
    %81 = arith.addf %18, %80 : vector<8x32xf32>
    %82 = math.tanh %81 : vector<8x32xf32>
    %83 = arith.truncf %82 : vector<8x32xf32> to vector<8x32xbf16>
    %cst_61 = arith.constant dense<0.000000e+00> : vector<8x32xf32>
    %84 = tpu.matmul %83, %73, %cst_61 {dimension_numbers = #tpu.dot_dimension_numbers<[1], [0], [0], [1], [0, 0, 1, 1], [], []>} : vector<8x32xbf16>, vector<32x32xbf16>, vector<8x32xf32> -> vector<8x32xf32>
    %85 = arith.addf %27, %84 : vector<8x32xf32>
    %86 = math.tanh %85 : vector<8x32xf32>
    %87 = arith.truncf %86 : vector<8x32xf32> to vector<8x32xbf16>
    %cst_62 = arith.constant dense<0.000000e+00> : vector<8x32xf32>
    %88 = tpu.matmul %87, %73, %cst_62 {dimension_numbers = #tpu.dot_dimension_numbers<[1], [0], [0], [1], [0, 0, 1, 1], [], []>} : vector<8x32xbf16>, vector<32x32xbf16>, vector<8x32xf32> -> vector<8x32xf32>
    %89 = arith.addf %36, %88 : vector<8x32xf32>
    %90 = math.tanh %89 : vector<8x32xf32>
    %91 = arith.truncf %90 : vector<8x32xf32> to vector<8x32xbf16>
    %cst_63 = arith.constant dense<0.000000e+00> : vector<8x32xf32>
    %92 = tpu.matmul %91, %73, %cst_63 {dimension_numbers = #tpu.dot_dimension_numbers<[1], [0], [0], [1], [0, 0, 1, 1], [], []>} : vector<8x32xbf16>, vector<32x32xbf16>, vector<8x32xf32> -> vector<8x32xf32>
    %93 = arith.addf %45, %92 : vector<8x32xf32>
    %94 = math.tanh %93 : vector<8x32xf32>
    %95 = arith.truncf %94 : vector<8x32xf32> to vector<8x32xbf16>
    %cst_64 = arith.constant dense<0.000000e+00> : vector<8x32xf32>
    %96 = tpu.matmul %95, %73, %cst_64 {dimension_numbers = #tpu.dot_dimension_numbers<[1], [0], [0], [1], [0, 0, 1, 1], [], []>} : vector<8x32xbf16>, vector<32x32xbf16>, vector<8x32xf32> -> vector<8x32xf32>
    %97 = arith.addf %54, %96 : vector<8x32xf32>
    %98 = math.tanh %97 : vector<8x32xf32>
    %99 = arith.truncf %98 : vector<8x32xf32> to vector<8x32xbf16>
    %cst_65 = arith.constant dense<0.000000e+00> : vector<8x32xf32>
    %100 = tpu.matmul %99, %73, %cst_65 {dimension_numbers = #tpu.dot_dimension_numbers<[1], [0], [0], [1], [0, 0, 1, 1], [], []>} : vector<8x32xbf16>, vector<32x32xbf16>, vector<8x32xf32> -> vector<8x32xf32>
    %101 = arith.addf %63, %100 : vector<8x32xf32>
    %102 = math.tanh %101 : vector<8x32xf32>
    %103 = arith.truncf %102 : vector<8x32xf32> to vector<8x32xbf16>
    %cst_66 = arith.constant dense<0.000000e+00> : vector<8x32xf32>
    %104 = tpu.matmul %103, %73, %cst_66 {dimension_numbers = #tpu.dot_dimension_numbers<[1], [0], [0], [1], [0, 0, 1, 1], [], []>} : vector<8x32xbf16>, vector<32x32xbf16>, vector<8x32xf32> -> vector<8x32xf32>
    %105 = arith.addf %72, %104 : vector<8x32xf32>
    %106 = math.tanh %105 : vector<8x32xf32>
    %107 = arith.truncf %106 : vector<8x32xf32> to vector<8x32xbf16>
    %c0_67 = arith.constant 0 : index
    %c0_68 = arith.constant 0 : index
    %108 = vector.load %arg3[%c0_67, %c0_68] : memref<32x128xbf16, #tpu.memory_space<vmem>>, vector<32x128xbf16>
    %cst_69 = arith.constant dense<0.000000e+00> : vector<8x128xf32>
    %109 = tpu.matmul %107, %108, %cst_69 {dimension_numbers = #tpu.dot_dimension_numbers<[1], [0], [0], [1], [0, 0, 1, 1], [], []>} : vector<8x32xbf16>, vector<32x128xbf16>, vector<8x128xf32> -> vector<8x128xf32>
    %c0_70 = arith.constant 0 : index
    %c0_71 = arith.constant 0 : index
    %110 = vector.load %arg4[%c0_70, %c0_71] : memref<1x128xf32, #tpu.memory_space<vmem>>, vector<1x128xf32>
    %111 = vector.broadcast %110 : vector<1x128xf32> to vector<8x128xf32>
    %112 = arith.addf %109, %111 : vector<8x128xf32>
    %c0_72 = arith.constant 0 : index
    %c0_73 = arith.constant 0 : index
    %113 = vector.load %arg5[%c0_72, %c0_73] : memref<8x128xf32, #tpu.memory_space<vmem>>, vector<8x128xf32>
    tpu.vector_store %arg5[%c0_72, %c0_73], %112 {strides = array<i32>} : memref<8x128xf32, #tpu.memory_space<vmem>>, vector<8x128xf32>,
    return
  }
}

</mosaic_0001>

<llo_original>
// kernel: tpu_custom_call.1
$region0: #{tpu_custom_call.1}
  #allocation0 [shape = 'u32[]', space=smem, size = 0x4, offset = 0x4, fixed_abs, tag = 'smem constant byte address 0x4 - core index']
  #allocation1 [shape = 'u32[144,128]{1,0:T(1,128)}', space=vmem, size = 0x12000, scoped, tag = 'internal scratch']
  %s0 = inlined_call_operand.hbm [shape: s32[2,8], index: 0, kind: input, shape index: {}]
  %s1 = inlined_call_operand.hbm [shape: f32[30,1,32], index: 1, kind: input, shape index: {}]
  %s2 = inlined_call_operand.hbm [shape: bf16[32,32], index: 2, kind: input, shape index: {}]
  %s3 = inlined_call_operand.hbm [shape: bf16[32,128], index: 3, kind: input, shape index: {}]
  %s4 = inlined_call_operand.vmem [shape: f32[1,128], index: 4, kind: input, shape index: {}]
  %s5 = inlined_call_operand.hbm [shape: f32[8,128], index: 5, kind: output, shape index: {}]
  %s6 = sld [smem:[#allocation0]]
  $region46: #{tpu_custom_call.1} parent=0
    _
  %s8 = ssub.s32 1, %s6
  %s9 = scalar_select 0, %s8, %s6
  $region1: #{tpu_custom_call.1} parent=0
    #allocation2 [shape = 'u8[1024]{0}', space=smem, size = 0x400, scoped, tag = 'input window, operand 0, single buffered']
    #allocation3 [shape = 's32[1]{0}', space=sflag, size = 0x4, scoped, tag = 'scoped memory for tpu_custom_call.1']
    #allocation4 [shape = 's32[1]{0}', space=sflag, size = 0x4, scoped, tag = 'scoped memory for tpu_custom_call.1']
    #allocation5 [shape = 's32[1]{0}', space=sflag, size = 0x4, scoped, tag = 'scoped memory for tpu_custom_call.1']
    #allocation6 [shape = 'u8[15360]{0}', space=vmem, size = 0x3c00, scoped, tag = 'input window, operand 1, single buffered']
    #allocation7 [shape = 'u8[8192]{0}', space=vmem, size = 0x2000, scoped, tag = 'input window, operand 2, single buffered']
    #allocation8 [shape = 's32[1]{0}', space=sflag, size = 0x4, scoped, tag = 'scoped memory for tpu_custom_call.1']
    #allocation9 [shape = 'u8[8192]{0}', space=vmem, size = 0x2000, scoped, tag = 'input window, operand 3, single buffered']
    #allocation10 [shape = 'u8[4096]{0}', space=vmem, size = 0x1000, scoped, tag = 'output window, operand 0, single buffered']
    %10 = vsyncpa [#allocation5], 0
    %11 = vsyncpa [#allocation3], 0
    %12 = vsyncpa [#allocation8], 0
    %13 = vsyncpa [#allocation4], 0
    // Predicated region
    $region2: #{tpu_custom_call.1} parent=1 // pred_check
      _
    $region3: #{tpu_custom_call.1} parent=1 // pred_check_branch
      %15 = sbr.rel (0) target = $region5
    $region4: #{tpu_custom_call.1} parent=1 // pred_region
      %s17 = ssub.s32 32, 32
      %18 = vsyncadd [#allocation5], %s17
      %21 = dma.hbm_to_smem %s0, 32, [#allocation2], [#allocation5]
    $region5: #{tpu_custom_call.1} parent=1 // pred_fallthru
      _
    // Predicated region
    $region6: #{tpu_custom_call.1} parent=1 // pred_check
      _
    $region7: #{tpu_custom_call.1} parent=1 // pred_check_branch
      %23 = sbr.rel (0) target = $region9
    $region8: #{tpu_custom_call.1} parent=1 // pred_region
      %s25 = ssub.s32 480, 480
      %26 = vsyncadd [#allocation3], %s25
      %s27 = sshll.u32 [#allocation6], 4
      %s28 = int_to_ptr.vmem [resolvable:$true] %s27
      %33 = dma.hbm_to_vmem [thread:$0]  %s1, 480, %s28, [#allocation3], 16, 16, 1
    $region9: #{tpu_custom_call.1} parent=1 // pred_fallthru
      _
    // Predicated region
    $region10: #{tpu_custom_call.1} parent=1 // pred_check
      _
    $region11: #{tpu_custom_call.1} parent=1 // pred_check_branch
      %35 = sbr.rel (0) target = $region13
    $region12: #{tpu_custom_call.1} parent=1 // pred_region
      %s37 = ssub.s32 256, 256
      %38 = vsyncadd [#allocation8], %s37
      %s39 = sshll.u32 [#allocation7], 4
      %s40 = int_to_ptr.vmem [resolvable:$true] %s39
      %45 = dma.hbm_to_vmem [thread:$0]  %s2, 256, %s40, [#allocation8], 64, 64, 4
    $region13: #{tpu_custom_call.1} parent=1 // pred_fallthru
      _
    // Predicated region
    $region14: #{tpu_custom_call.1} parent=1 // pred_check
      _
    $region15: #{tpu_custom_call.1} parent=1 // pred_check_branch
      %47 = sbr.rel (0) target = $region17
    $region16: #{tpu_custom_call.1} parent=1 // pred_region
      %s49 = ssub.s32 256, 256
      %50 = vsyncadd [#allocation8], %s49
      %s51 = sshll.u32 [#allocation9], 4
      %s52 = int_to_ptr.vmem [resolvable:$true] %s51
      %57 = dma.hbm_to_vmem [thread:$0]  %s3, 256, %s52, [#allocation8], 64, 64, 4
    $region17: #{tpu_custom_call.1} parent=1 // pred_fallthru
      _
    // Predicated region
    $region18: #{tpu_custom_call.1} parent=1 // pred_check
      _
    $region19: #{tpu_custom_call.1} parent=1 // pred_check_branch
      %59 = sbr.rel (0) target = $region21
    $region20: #{tpu_custom_call.1} parent=1 // pred_region
      _
    $region21: #{tpu_custom_call.1} parent=1 // pred_fallthru
      _
    // Predicated region
    $region22: #{tpu_custom_call.1} parent=1 // pred_check
      _
    $region23: #{tpu_custom_call.1} parent=1 // pred_check_branch
      %61 = sbr.rel (0) target = $region25
    $region24: #{tpu_custom_call.1} parent=1 // pred_region
      %62 = dma.done [#allocation5], 32
    $region25: #{tpu_custom_call.1} parent=1 // pred_fallthru
      _
    // Predicated region
    $region26: #{tpu_custom_call.1} parent=1 // pred_check
      _
    $region27: #{tpu_custom_call.1} parent=1 // pred_check_branch
      %64 = sbr.rel (0) target = $region29
    $region28: #{tpu_custom_call.1} parent=1 // pred_region
      %65 = dma.done [#allocation3], 480
    $region29: #{tpu_custom_call.1} parent=1 // pred_fallthru
      _
    // Predicated region
    $region30: #{tpu_custom_call.1} parent=1 // pred_check
      _
    $region31: #{tpu_custom_call.1} parent=1 // pred_check_branch
      %67 = sbr.rel (0) target = $region33
    $region32: #{tpu_custom_call.1} parent=1 // pred_region
      %68 = dma.done [#allocation8], 256
    $region33: #{tpu_custom_call.1} parent=1 // pred_fallthru
      _
    // Predicated region
    $region34: #{tpu_custom_call.1} parent=1 // pred_check
      _
    $region35: #{tpu_custom_call.1} parent=1 // pred_check_branch
      %70 = sbr.rel (0) target = $region37
    $region36: #{tpu_custom_call.1} parent=1 // pred_region
      %71 = dma.done [#allocation8], 256
    $region37: #{tpu_custom_call.1} parent=1 // pred_fallthru
      _
    %72 = sfence
    %s74 = sld [smem:[#allocation2]]
    %s75 = scalar_lea.vmem [#allocation6], %s74
    %v76 = vld [vmem:[%s75] sm:$0x1]
    %s77 = sld [smem:[#allocation2 + $0x80]]
    %s78 = scalar_lea.vmem [#allocation6], %s77
    %v79 = vld [vmem:[%s78] sm:$0x1]
    %v81 = vlaneseq
    %v82 = vshrl.u32 %v81, 7
    %v83 = vsub.s32 0, %v82
    %v84 = vrot.slane %v79, %v83
    %vm86 = vcmask 1040384
    %v87 = vsel %vm86, %v76, %v84
    %vm88 = vcmask 1041408
    %v89 = vsel %vm88, %v87, 0.0
    %vm90 = vcmask 1042432
    %v91 = vsel %vm90, %v89, 0.0
    %vm92 = vcmask 1043456
    %v93 = vsel %vm92, %v91, 0.0
    %vm94 = vcmask 1044480
    %v95 = vsel %vm94, %v93, 0.0
    %vm96 = vcmask 1045504
    %v97 = vsel %vm96, %v95, 0.0
    %vm98 = vcmask 1046528
    %v99 = vsel %vm98, %v97, 0.0
    %s100 = sld [smem:[#allocation2 + $0x1]]
    %s101 = scalar_lea.vmem [#allocation6], %s100
    %v102 = vld [vmem:[%s101] sm:$0x1]
    %s103 = sld [smem:[#allocation2 + $0x81]]
    %s104 = scalar_lea.vmem [#allocation6], %s103
    %v105 = vld [vmem:[%s104] sm:$0x1]
    %v107 = vlaneseq
    %v108 = vshrl.u32 %v107, 7
    %v109 = vsub.s32 0, %v108
    %v110 = vrot.slane %v105, %v109
    %v112 = vsel %vm86, %v102, %v110
    %v113 = vsel %vm88, %v112, 0.0
    %v114 = vsel %vm90, %v113, 0.0
    %v115 = vsel %vm92, %v114, 0.0
    %v116 = vsel %vm94, %v115, 0.0
    %v117 = vsel %vm96, %v116, 0.0
    %v118 = vsel %vm98, %v117, 0.0
    %s119 = sld [smem:[#allocation2 + $0x2]]
    %s120 = scalar_lea.vmem [#allocation6], %s119
    %v121 = vld [vmem:[%s120] sm:$0x1]
    %s122 = sld [smem:[#allocation2 + $0x82]]
    %s123 = scalar_lea.vmem [#allocation6], %s122
    %v124 = vld [vmem:[%s123] sm:$0x1]
    %v126 = vlaneseq
    %v127 = vshrl.u32 %v126, 7
    %v128 = vsub.s32 0, %v127
    %v129 = vrot.slane %v124, %v128
    %v131 = vsel %vm86, %v121, %v129
    %v132 = vsel %vm88, %v131, 0.0
    %v133 = vsel %vm90, %v132, 0.0
    %v134 = vsel %vm92, %v133, 0.0
    %v135 = vsel %vm94, %v134, 0.0
    %v136 = vsel %vm96, %v135, 0.0
    %v137 = vsel %vm98, %v136, 0.0
    %s138 = sld [smem:[#allocation2 + $0x3]]
    %s139 = scalar_lea.vmem [#allocation6], %s138
    %v140 = vld [vmem:[%s139] sm:$0x1]
    %s141 = sld [smem:[#allocation2 + $0x83]]
    %s142 = scalar_lea.vmem [#allocation6], %s141
    %v143 = vld [vmem:[%s142] sm:$0x1]
    %v145 = vlaneseq
    %v146 = vshrl.u32 %v145, 7
    %v147 = vsub.s32 0, %v146
    %v148 = vrot.slane %v143, %v147
    %v150 = vsel %vm86, %v140, %v148
    %v151 = vsel %vm88, %v150, 0.0
    %v152 = vsel %vm90, %v151, 0.0
    %v153 = vsel %vm92, %v152, 0.0
    %v154 = vsel %vm94, %v153, 0.0
    %v155 = vsel %vm96, %v154, 0.0
    %v156 = vsel %vm98, %v155, 0.0
    %s157 = sld [smem:[#allocation2 + $0x4]]
    %s158 = scalar_lea.vmem [#allocation6], %s157
    %v159 = vld [vmem:[%s158] sm:$0x1]
    %s160 = sld [smem:[#allocation2 + $0x84]]
    %s161 = scalar_lea.vmem [#allocation6], %s160
    %v162 = vld [vmem:[%s161] sm:$0x1]
    %v164 = vlaneseq
    %v165 = vshrl.u32 %v164, 7
    %v166 = vsub.s32 0, %v165
    %v167 = vrot.slane %v162, %v166
    %v169 = vsel %vm86, %v159, %v167
    %v170 = vsel %vm88, %v169, 0.0
    %v171 = vsel %vm90, %v170, 0.0
    %v172 = vsel %vm92, %v171, 0.0
    %v173 = vsel %vm94, %v172, 0.0
    %v174 = vsel %vm96, %v173, 0.0
    %v175 = vsel %vm98, %v174, 0.0
    %s176 = sld [smem:[#allocation2 + $0x5]]
    %s177 = scalar_lea.vmem [#allocation6], %s176
    %v178 = vld [vmem:[%s177] sm:$0x1]
    %s179 = sld [smem:[#allocation2 + $0x85]]
    %s180 = scalar_lea.vmem [#allocation6], %s179
    %v181 = vld [vmem:[%s180] sm:$0x1]
    %v183 = vlaneseq
    %v184 = vshrl.u32 %v183, 7
    %v185 = vsub.s32 0, %v184
    %v186 = vrot.slane %v181, %v185
    %v188 = vsel %vm86, %v178, %v186
    %v189 = vsel %vm88, %v188, 0.0
    %v190 = vsel %vm90, %v189, 0.0
    %v191 = vsel %vm92, %v190, 0.0
    %v192 = vsel %vm94, %v191, 0.0
    %v193 = vsel %vm96, %v192, 0.0
    %v194 = vsel %vm98, %v193, 0.0
    %s195 = sld [smem:[#allocation2 + $0x6]]
    %s196 = scalar_lea.vmem [#allocation6], %s195
    %v197 = vld [vmem:[%s196] sm:$0x1]
    %s198 = sld [smem:[#allocation2 + $0x86]]
    %s199 = scalar_lea.vmem [#allocation6], %s198
    %v200 = vld [vmem:[%s199] sm:$0x1]
    %v202 = vlaneseq
    %v203 = vshrl.u32 %v202, 7
    %v204 = vsub.s32 0, %v203
    %v205 = vrot.slane %v200, %v204
    %v207 = vsel %vm86, %v197, %v205
    %v208 = vsel %vm88, %v207, 0.0
    %v209 = vsel %vm90, %v208, 0.0
    %v210 = vsel %vm92, %v209, 0.0
    %v211 = vsel %vm94, %v210, 0.0
    %v212 = vsel %vm96, %v211, 0.0
    %v213 = vsel %vm98, %v212, 0.0
    %s214 = sld [smem:[#allocation2 + $0x7]]
    %s215 = scalar_lea.vmem [#allocation6], %s214
    %v216 = vld [vmem:[%s215] sm:$0x1]
    %s217 = sld [smem:[#allocation2 + $0x87]]
    %s218 = scalar_lea.vmem [#allocation6], %s217
    %v219 = vld [vmem:[%s218] sm:$0x1]
    %v221 = vlaneseq
    %v222 = vshrl.u32 %v221, 7
    %v223 = vsub.s32 0, %v222
    %v224 = vrot.slane %v219, %v223
    %v226 = vsel %vm86, %v216, %v224
    %v227 = vsel %vm88, %v226, 0.0
    %v228 = vsel %vm90, %v227, 0.0
    %v229 = vsel %vm92, %v228, 0.0
    %v230 = vsel %vm94, %v229, 0.0
    %v231 = vsel %vm96, %v230, 0.0
    %v232 = vsel %vm98, %v231, 0.0
    %v233 = vld [vmem:[#allocation7] sm:$0xf]
    %v234 = vld [vmem:[#allocation7 + $0x4] sm:$0xf]
    %v235 = vld [vmem:[#allocation7 + $0x8] sm:$0xf]
    %v236 = vld [vmem:[#allocation7 + $0xc] sm:$0xf]
    %v241 = vunpack.c.l.b16 %v233
    %v242 = vunpack.c.l.b16 %v234
    %v243 = vunpack.c.l.b16 %v235
    %v244 = vunpack.c.l.b16 %v236
    %v245 = vpack.c.b16 %v242, %v241
    %v246 = vpack.c.b16 %v244, %v243
    %vm249 = vcmask 261120
    %v251 = vsel %vm249, 0, 0
    %253 = vmatprep.subr.bf16.mxu0 0
    %254 = vmatpush1.bf16.msra.mxu0 %v245
    %255 = vmatprep.subr.bf16.mxu0 0
    %256 = vmatpush1.bf16.msra.mxu0 %v246
    %257 = vmatprep.subr.bf16.mxu0 0
    %258 = vmatpush1.bf16.msra.mxu0 0
    %259 = vmatprep.subr.bf16.mxu0 0
    %260 = vmatpush1.bf16.msra.mxu0 0
    %261 = vmatprep.subr.bf16.mxu0 0
    %262 = vmatpush1.bf16.msra.mxu0 0
    %263 = vmatprep.subr.bf16.mxu0 0
    %264 = vmatpush1.bf16.msra.mxu0 0
    %265 = vmatprep.subr.bf16.mxu0 0
    %266 = vmatpush1.bf16.msra.mxu0 0
    %267 = vmatprep.subr.bf16.mxu0 0
    %268 = vmatpush1.bf16.msra.mxu0 0
    %269 = vmatprep.subr.bf16.mxu0 0
    %270 = vmatpush1.bf16.msra.mxu0 0
    %271 = vmatprep.subr.bf16.mxu0 0
    %272 = vmatpush1.bf16.msra.mxu0 0
    %273 = vmatprep.subr.bf16.mxu0 0
    %274 = vmatpush1.bf16.msra.mxu0 0
    %275 = vmatprep.subr.bf16.mxu0 0
    %276 = vmatpush1.bf16.msra.mxu0 0
    %277 = vmatprep.subr.bf16.mxu0 0
    %278 = vmatpush1.bf16.msra.mxu0 0
    %279 = vmatprep.subr.bf16.mxu0 0
    %280 = vmatpush1.bf16.msra.mxu0 0
    %281 = vmatprep.subr.bf16.mxu0 0
    %282 = vmatpush1.bf16.msra.mxu0 0
    %283 = vmatprep.subr.bf16.mxu0 0
    %284 = vmatpush1.bf16.msra.mxu0 0
    %285 = vmatprep.mubr.bf16.mxu0 0
    %286 = vmatmul.mubr.bf16.gmra.mrb[0].mxu0 %v251
    %v287 = vpop.f32.mrb[0].mxu0
    %v288 = vadd.f32 0.0, %v287
    %v289 = vpop.f32.mrb[0].mxu0
    %v290 = vpop.f32.mrb[0].mxu0
    %v291 = vpop.f32.mrb[0].mxu0
    %292 = vdwg.mxu0
    %v293 = vadd.f32 %v99, %v288
    %v294 = vtanh.pop %v293
    %v295 = vpack.c.bf16 %v294, %v294
    %v297 = vsel %vm249, %v295, 0
    %299 = vmatprep.subr.bf16.mxu0 0
    %300 = vmatpush1.bf16.msra.mxu0 %v245
    %301 = vmatprep.subr.bf16.mxu0 0
    %302 = vmatpush1.bf16.msra.mxu0 %v246
    %303 = vmatprep.subr.bf16.mxu0 0
    %304 = vmatpush1.bf16.msra.mxu0 0
    %305 = vmatprep.subr.bf16.mxu0 0
    %306 = vmatpush1.bf16.msra.mxu0 0
    %307 = vmatprep.subr.bf16.mxu0 0
    %308 = vmatpush1.bf16.msra.mxu0 0
    %309 = vmatprep.subr.bf16.mxu0 0
    %310 = vmatpush1.bf16.msra.mxu0 0
    %311 = vmatprep.subr.bf16.mxu0 0
    %312 = vmatpush1.bf16.msra.mxu0 0
    %313 = vmatprep.subr.bf16.mxu0 0
    %314 = vmatpush1.bf16.msra.mxu0 0
    %315 = vmatprep.subr.bf16.mxu0 0
    %316 = vmatpush1.bf16.msra.mxu0 0
    %317 = vmatprep.subr.bf16.mxu0 0
    %318 = vmatpush1.bf16.msra.mxu0 0
    %319 = vmatprep.subr.bf16.mxu0 0
    %320 = vmatpush1.bf16.msra.mxu0 0
    %321 = vmatprep.subr.bf16.mxu0 0
    %322 = vmatpush1.bf16.msra.mxu0 0
    %323 = vmatprep.subr.bf16.mxu0 0
    %324 = vmatpush1.bf16.msra.mxu0 0
    %325 = vmatprep.subr.bf16.mxu0 0
    %326 = vmatpush1.bf16.msra.mxu0 0
    %327 = vmatprep.subr.bf16.mxu0 0
    %328 = vmatpush1.bf16.msra.mxu0 0
    %329 = vmatprep.subr.bf16.mxu0 0
    %330 = vmatpush1.bf16.msra.mxu0 0
    %331 = vmatprep.mubr.bf16.mxu0 0
    %332 = vmatmul.mubr.bf16.gmra.mrb[0].mxu0 %v297
    %v333 = vpop.f32.mrb[0].mxu0
    %v334 = vadd.f32 0.0, %v333
    %v335 = vpop.f32.mrb[0].mxu0
    %v336 = vpop.f32.mrb[0].mxu0
    %v337 = vpop.f32.mrb[0].mxu0
    %338 = vdwg.mxu0
    %v339 = vadd.f32 %v118, %v334
    %v340 = vtanh.pop %v339
    %v341 = vpack.c.bf16 %v340, %v340
    %v343 = vsel %vm249, %v341, 0
    %345 = vmatprep.subr.bf16.mxu0 0
    %346 = vmatpush1.bf16.msra.mxu0 %v245
    %347 = vmatprep.subr.bf16.mxu0 0
    %348 = vmatpush1.bf16.msra.mxu0 %v246
    %349 = vmatprep.subr.bf16.mxu0 0
    %350 = vmatpush1.bf16.msra.mxu0 0
    %351 = vmatprep.subr.bf16.mxu0 0
    %352 = vmatpush1.bf16.msra.mxu0 0
    %353 = vmatprep.subr.bf16.mxu0 0
    %354 = vmatpush1.bf16.msra.mxu0 0
    %355 = vmatprep.subr.bf16.mxu0 0
    %356 = vmatpush1.bf16.msra.mxu0 0
    %357 = vmatprep.subr.bf16.mxu0 0
    %358 = vmatpush1.bf16.msra.mxu0 0
    %359 = vmatprep.subr.bf16.mxu0 0
    %360 = vmatpush1.bf16.msra.mxu0 0
    %361 = vmatprep.subr.bf16.mxu0 0
    %362 = vmatpush1.bf16.msra.mxu0 0
    %363 = vmatprep.subr.bf16.mxu0 0
    %364 = vmatpush1.bf16.msra.mxu0 0
    %365 = vmatprep.subr.bf16.mxu0 0
    %366 = vmatpush1.bf16.msra.mxu0 0
    %367 = vmatprep.subr.bf16.mxu0 0
    %368 = vmatpush1.bf16.msra.mxu0 0
    %369 = vmatprep.subr.bf16.mxu0 0
    %370 = vmatpush1.bf16.msra.mxu0 0
    %371 = vmatprep.subr.bf16.mxu0 0
    %372 = vmatpush1.bf16.msra.mxu0 0
    %373 = vmatprep.subr.bf16.mxu0 0
    %374 = vmatpush1.bf16.msra.mxu0 0
    %375 = vmatprep.subr.bf16.mxu0 0
    %376 = vmatpush1.bf16.msra.mxu0 0
    %377 = vmatprep.mubr.bf16.mxu0 0
    %378 = vmatmul.mubr.bf16.gmra.mrb[0].mxu0 %v343
    %v379 = vpop.f32.mrb[0].mxu0
    %v380 = vadd.f32 0.0, %v379
    %v381 = vpop.f32.mrb[0].mxu0
    %v382 = vpop.f32.mrb[0].mxu0
    %v383 = vpop.f32.mrb[0].mxu0
    %384 = vdwg.mxu0
    %v385 = vadd.f32 %v137, %v380
    %v386 = vtanh.pop %v385
    %v387 = vpack.c.bf16 %v386, %v386
    %v389 = vsel %vm249, %v387, 0
    %391 = vmatprep.subr.bf16.mxu0 0
    %392 = vmatpush1.bf16.msra.mxu0 %v245
    %393 = vmatprep.subr.bf16.mxu0 0
    %394 = vmatpush1.bf16.msra.mxu0 %v246
    %395 = vmatprep.subr.bf16.mxu0 0
    %396 = vmatpush1.bf16.msra.mxu0 0
    %397 = vmatprep.subr.bf16.mxu0 0
    %398 = vmatpush1.bf16.msra.mxu0 0
    %399 = vmatprep.subr.bf16.mxu0 0
    %400 = vmatpush1.bf16.msra.mxu0 0
    %401 = vmatprep.subr.bf16.mxu0 0
    %402 = vmatpush1.bf16.msra.mxu0 0
    %403 = vmatprep.subr.bf16.mxu0 0
    %404 = vmatpush1.bf16.msra.mxu0 0
    %405 = vmatprep.subr.bf16.mxu0 0
    %406 = vmatpush1.bf16.msra.mxu0 0
    %407 = vmatprep.subr.bf16.mxu0 0
    %408 = vmatpush1.bf16.msra.mxu0 0
    %409 = vmatprep.subr.bf16.mxu0 0
    %410 = vmatpush1.bf16.msra.mxu0 0
    %411 = vmatprep.subr.bf16.mxu0 0
    %412 = vmatpush1.bf16.msra.mxu0 0
    %413 = vmatprep.subr.bf16.mxu0 0
    %414 = vmatpush1.bf16.msra.mxu0 0
    %415 = vmatprep.subr.bf16.mxu0 0
    %416 = vmatpush1.bf16.msra.mxu0 0
    %417 = vmatprep.subr.bf16.mxu0 0
    %418 = vmatpush1.bf16.msra.mxu0 0
    %419 = vmatprep.subr.bf16.mxu0 0
    %420 = vmatpush1.bf16.msra.mxu0 0
    %421 = vmatprep.subr.bf16.mxu0 0
    %422 = vmatpush1.bf16.msra.mxu0 0
    %423 = vmatprep.mubr.bf16.mxu0 0
    %424 = vmatmul.mubr.bf16.gmra.mrb[0].mxu0 %v389
    %v425 = vpop.f32.mrb[0].mxu0
    %v426 = vadd.f32 0.0, %v425
    %v427 = vpop.f32.mrb[0].mxu0
    %v428 = vpop.f32.mrb[0].mxu0
    %v429 = vpop.f32.mrb[0].mxu0
    %430 = vdwg.mxu0
    %v431 = vadd.f32 %v156, %v426
    %v432 = vtanh.pop %v431
    %v433 = vpack.c.bf16 %v432, %v432
    %v435 = vsel %vm249, %v433, 0
    %437 = vmatprep.subr.bf16.mxu0 0
    %438 = vmatpush1.bf16.msra.mxu0 %v245
    %439 = vmatprep.subr.bf16.mxu0 0
    %440 = vmatpush1.bf16.msra.mxu0 %v246
    %441 = vmatprep.subr.bf16.mxu0 0
    %442 = vmatpush1.bf16.msra.mxu0 0
    %443 = vmatprep.subr.bf16.mxu0 0
    %444 = vmatpush1.bf16.msra.mxu0 0
    %445 = vmatprep.subr.bf16.mxu0 0
    %446 = vmatpush1.bf16.msra.mxu0 0
    %447 = vmatprep.subr.bf16.mxu0 0
    %448 = vmatpush1.bf16.msra.mxu0 0
    %449 = vmatprep.subr.bf16.mxu0 0
    %450 = vmatpush1.bf16.msra.mxu0 0
    %451 = vmatprep.subr.bf16.mxu0 0
    %452 = vmatpush1.bf16.msra.mxu0 0
    %453 = vmatprep.subr.bf16.mxu0 0
    %454 = vmatpush1.bf16.msra.mxu0 0
    %455 = vmatprep.subr.bf16.mxu0 0
    %456 = vmatpush1.bf16.msra.mxu0 0
    %457 = vmatprep.subr.bf16.mxu0 0
    %458 = vmatpush1.bf16.msra.mxu0 0
    %459 = vmatprep.subr.bf16.mxu0 0
    %460 = vmatpush1.bf16.msra.mxu0 0
    %461 = vmatprep.subr.bf16.mxu0 0
    %462 = vmatpush1.bf16.msra.mxu0 0
    %463 = vmatprep.subr.bf16.mxu0 0
    %464 = vmatpush1.bf16.msra.mxu0 0
    %465 = vmatprep.subr.bf16.mxu0 0
    %466 = vmatpush1.bf16.msra.mxu0 0
    %467 = vmatprep.subr.bf16.mxu0 0
    %468 = vmatpush1.bf16.msra.mxu0 0
    %469 = vmatprep.mubr.bf16.mxu0 0
    %470 = vmatmul.mubr.bf16.gmra.mrb[0].mxu0 %v435
    %v471 = vpop.f32.mrb[0].mxu0
    %v472 = vadd.f32 0.0, %v471
    %v473 = vpop.f32.mrb[0].mxu0
    %v474 = vpop.f32.mrb[0].mxu0
    %v475 = vpop.f32.mrb[0].mxu0
    %476 = vdwg.mxu0
    %v477 = vadd.f32 %v175, %v472
    %v478 = vtanh.pop %v477
    %v479 = vpack.c.bf16 %v478, %v478
    %v481 = vsel %vm249, %v479, 0
    %483 = vmatprep.subr.bf16.mxu0 0
    %484 = vmatpush1.bf16.msra.mxu0 %v245
    %485 = vmatprep.subr.bf16.mxu0 0
    %486 = vmatpush1.bf16.msra.mxu0 %v246
    %487 = vmatprep.subr.bf16.mxu0 0
    %488 = vmatpush1.bf16.msra.mxu0 0
    %489 = vmatprep.subr.bf16.mxu0 0
    %490 = vmatpush1.bf16.msra.mxu0 0
    %491 = vmatprep.subr.bf16.mxu0 0
    %492 = vmatpush1.bf16.msra.mxu0 0
    %493 = vmatprep.subr.bf16.mxu0 0
    %494 = vmatpush1.bf16.msra.mxu0 0
    %495 = vmatprep.subr.bf16.mxu0 0
    %496 = vmatpush1.bf16.msra.mxu0 0
    %497 = vmatprep.subr.bf16.mxu0 0
    %498 = vmatpush1.bf16.msra.mxu0 0
    %499 = vmatprep.subr.bf16.mxu0 0
    %500 = vmatpush1.bf16.msra.mxu0 0
    %501 = vmatprep.subr.bf16.mxu0 0
    %502 = vmatpush1.bf16.msra.mxu0 0
    %503 = vmatprep.subr.bf16.mxu0 0
    %504 = vmatpush1.bf16.msra.mxu0 0
    %505 = vmatprep.subr.bf16.mxu0 0
    %506 = vmatpush1.bf16.msra.mxu0 0
    %507 = vmatprep.subr.bf16.mxu0 0
    %508 = vmatpush1.bf16.msra.mxu0 0
    %509 = vmatprep.subr.bf16.mxu0 0
    %510 = vmatpush1.bf16.msra.mxu0 0
    %511 = vmatprep.subr.bf16.mxu0 0
    %512 = vmatpush1.bf16.msra.mxu0 0
    %513 = vmatprep.subr.bf16.mxu0 0
    %514 = vmatpush1.bf16.msra.mxu0 0
    %515 = vmatprep.mubr.bf16.mxu0 0
    %516 = vmatmul.mubr.bf16.gmra.mrb[0].mxu0 %v481
    %v517 = vpop.f32.mrb[0].mxu0
    %v518 = vadd.f32 0.0, %v517
    %v519 = vpop.f32.mrb[0].mxu0
    %v520 = vpop.f32.mrb[0].mxu0
    %v521 = vpop.f32.mrb[0].mxu0
    %522 = vdwg.mxu0
    %v523 = vadd.f32 %v194, %v518
    %v524 = vtanh.pop %v523
    %v525 = vpack.c.bf16 %v524, %v524
    %v527 = vsel %vm249, %v525, 0
    %529 = vmatprep.subr.bf16.mxu0 0
    %530 = vmatpush1.bf16.msra.mxu0 %v245
    %531 = vmatprep.subr.bf16.mxu0 0
    %532 = vmatpush1.bf16.msra.mxu0 %v246
    %533 = vmatprep.subr.bf16.mxu0 0
    %534 = vmatpush1.bf16.msra.mxu0 0
    %535 = vmatprep.subr.bf16.mxu0 0
    %536 = vmatpush1.bf16.msra.mxu0 0
    %537 = vmatprep.subr.bf16.mxu0 0
    %538 = vmatpush1.bf16.msra.mxu0 0
    %539 = vmatprep.subr.bf16.mxu0 0
    %540 = vmatpush1.bf16.msra.mxu0 0
    %541 = vmatprep.subr.bf16.mxu0 0
    %542 = vmatpush1.bf16.msra.mxu0 0
    %543 = vmatprep.subr.bf16.mxu0 0
    %544 = vmatpush1.bf16.msra.mxu0 0
    %545 = vmatprep.subr.bf16.mxu0 0
    %546 = vmatpush1.bf16.msra.mxu0 0
    %547 = vmatprep.subr.bf16.mxu0 0
    %548 = vmatpush1.bf16.msra.mxu0 0
    %549 = vmatprep.subr.bf16.mxu0 0
    %550 = vmatpush1.bf16.msra.mxu0 0
    %551 = vmatprep.subr.bf16.mxu0 0
    %552 = vmatpush1.bf16.msra.mxu0 0
    %553 = vmatprep.subr.bf16.mxu0 0
    %554 = vmatpush1.bf16.msra.mxu0 0
    %555 = vmatprep.subr.bf16.mxu0 0
    %556 = vmatpush1.bf16.msra.mxu0 0
    %557 = vmatprep.subr.bf16.mxu0 0
    %558 = vmatpush1.bf16.msra.mxu0 0
    %559 = vmatprep.subr.bf16.mxu0 0
    %560 = vmatpush1.bf16.msra.mxu0 0
    %561 = vmatprep.mubr.bf16.mxu0 0
    %562 = vmatmul.mubr.bf16.gmra.mrb[0].mxu0 %v527
    %v563 = vpop.f32.mrb[0].mxu0
    %v564 = vadd.f32 0.0, %v563
    %v565 = vpop.f32.mrb[0].mxu0
    %v566 = vpop.f32.mrb[0].mxu0
    %v567 = vpop.f32.mrb[0].mxu0
    %568 = vdwg.mxu0
    %v569 = vadd.f32 %v213, %v564
    %v570 = vtanh.pop %v569
    %v571 = vpack.c.bf16 %v570, %v570
    %v573 = vsel %vm249, %v571, 0
    %575 = vmatprep.subr.bf16.mxu0 0
    %576 = vmatpush1.bf16.msra.mxu0 %v245
    %577 = vmatprep.subr.bf16.mxu0 0
    %578 = vmatpush1.bf16.msra.mxu0 %v246
    %579 = vmatprep.subr.bf16.mxu0 0
    %580 = vmatpush1.bf16.msra.mxu0 0
    %581 = vmatprep.subr.bf16.mxu0 0
    %582 = vmatpush1.bf16.msra.mxu0 0
    %583 = vmatprep.subr.bf16.mxu0 0
    %584 = vmatpush1.bf16.msra.mxu0 0
    %585 = vmatprep.subr.bf16.mxu0 0
    %586 = vmatpush1.bf16.msra.mxu0 0
    %587 = vmatprep.subr.bf16.mxu0 0
    %588 = vmatpush1.bf16.msra.mxu0 0
    %589 = vmatprep.subr.bf16.mxu0 0
    %590 = vmatpush1.bf16.msra.mxu0 0
    %591 = vmatprep.subr.bf16.mxu0 0
    %592 = vmatpush1.bf16.msra.mxu0 0
    %593 = vmatprep.subr.bf16.mxu0 0
    %594 = vmatpush1.bf16.msra.mxu0 0
    %595 = vmatprep.subr.bf16.mxu0 0
    %596 = vmatpush1.bf16.msra.mxu0 0
    %597 = vmatprep.subr.bf16.mxu0 0
    %598 = vmatpush1.bf16.msra.mxu0 0
    %599 = vmatprep.subr.bf16.mxu0 0
    %600 = vmatpush1.bf16.msra.mxu0 0
    %601 = vmatprep.subr.bf16.mxu0 0
    %602 = vmatpush1.bf16.msra.mxu0 0
    %603 = vmatprep.subr.bf16.mxu0 0
    %604 = vmatpush1.bf16.msra.mxu0 0
    %605 = vmatprep.subr.bf16.mxu0 0
    %606 = vmatpush1.bf16.msra.mxu0 0
    %607 = vmatprep.mubr.bf16.mxu0 0
    %608 = vmatmul.mubr.bf16.gmra.mrb[0].mxu0 %v573
    %v609 = vpop.f32.mrb[0].mxu0
    %v610 = vadd.f32 0.0, %v609
    %v611 = vpop.f32.mrb[0].mxu0
    %v612 = vpop.f32.mrb[0].mxu0
    %v613 = vpop.f32.mrb[0].mxu0
    %614 = vdwg.mxu0
    %v615 = vadd.f32 %v232, %v610
    %v616 = vtanh.pop %v615
    %v617 = vpack.c.bf16 %v616, %v616
    %v618 = vld [vmem:[#allocation9] sm:$0xf]
    %v619 = vld [vmem:[#allocation9 + $0x4] sm:$0xf]
    %v620 = vld [vmem:[#allocation9 + $0x8] sm:$0xf]
    %v621 = vld [vmem:[#allocation9 + $0xc] sm:$0xf]
    %v622 = vld [vmem:[%s4] sm:$0x1]
    %v624 = vlaneseq
    %v625 = vshrl.u32 %v624, 7
    %v626 = vsub.s32 0, %v625
    %v627 = vrot.slane %v622, %v626
    %v633 = vunpack.c.l.b16 %v618
    %v634 = vunpack.c.l.b16 %v619
    %v635 = vunpack.c.l.b16 %v620
    %v636 = vunpack.c.l.b16 %v621
    %v637 = vpack.c.b16 %v634, %v633
    %v638 = vpack.c.b16 %v636, %v635
    %v642 = vsel %vm249, %v617, 0
    %644 = vmatprep.subr.bf16.mxu0 0
    %645 = vmatpush1.bf16.msra.mxu0 %v637
    %646 = vmatprep.subr.bf16.mxu0 0
    %647 = vmatpush1.bf16.msra.mxu0 %v638
    %648 = vmatprep.subr.bf16.mxu0 0
    %649 = vmatpush1.bf16.msra.mxu0 0
    %650 = vmatprep.subr.bf16.mxu0 0
    %651 = vmatpush1.bf16.msra.mxu0 0
    %652 = vmatprep.subr.bf16.mxu0 0
    %653 = vmatpush1.bf16.msra.mxu0 0
    %654 = vmatprep.subr.bf16.mxu0 0
    %655 = vmatpush1.bf16.msra.mxu0 0
    %656 = vmatprep.subr.bf16.mxu0 0
    %657 = vmatpush1.bf16.msra.mxu0 0
    %658 = vmatprep.subr.bf16.mxu0 0
    %659 = vmatpush1.bf16.msra.mxu0 0
    %660 = vmatprep.subr.bf16.mxu0 0
    %661 = vmatpush1.bf16.msra.mxu0 0
    %662 = vmatprep.subr.bf16.mxu0 0
    %663 = vmatpush1.bf16.msra.mxu0 0
    %664 = vmatprep.subr.bf16.mxu0 0
    %665 = vmatpush1.bf16.msra.mxu0 0
    %666 = vmatprep.subr.bf16.mxu0 0
    %667 = vmatpush1.bf16.msra.mxu0 0
    %668 = vmatprep.subr.bf16.mxu0 0
    %669 = vmatpush1.bf16.msra.mxu0 0
    %670 = vmatprep.subr.bf16.mxu0 0
    %671 = vmatpush1.bf16.msra.mxu0 0
    %672 = vmatprep.subr.bf16.mxu0 0
    %673 = vmatpush1.bf16.msra.mxu0 0
    %674 = vmatprep.subr.bf16.mxu0 0
    %675 = vmatpush1.bf16.msra.mxu0 0
    %676 = vmatprep.mubr.bf16.mxu0 0
    %677 = vmatmul.mubr.bf16.gmra.mrb[0].mxu0 %v642
    %v678 = vpop.f32.mrb[0].mxu0
    %v679 = vadd.f32 %v627, %v678
    %v680 = vpop.f32.mrb[0].mxu0
    %v681 = vpop.f32.mrb[0].mxu0
    %v682 = vpop.f32.mrb[0].mxu0
    %683 = vdwg.mxu0
    %684 = vst [vmem:[#allocation10] sm:$0xff] %v679
    // Predicated region
    $region38: #{tpu_custom_call.1} parent=1 // pred_check
      _
    $region39: #{tpu_custom_call.1} parent=1 // pred_check_branch
      %686 = sbr.rel (0) target = $region41
    $region40: #{tpu_custom_call.1} parent=1 // pred_region
      %s688 = ssub.s32 128, 128
      %689 = vsyncadd [#allocation4], %s688
      %s691 = sshll.u32 [#allocation10], 4
      %s692 = int_to_ptr.vmem [resolvable:$true] %s691
      %694 = dma.vmem_to_hbm [thread:$0]  %s692, 128, %s5, [#allocation4]
    $region41: #{tpu_custom_call.1} parent=1 // pred_fallthru
      _
    // Predicated region
    $region42: #{tpu_custom_call.1} parent=1 // pred_check
      _
    $region43: #{tpu_custom_call.1} parent=1 // pred_check_branch
      %696 = sbr.rel (0) target = $region45
    $region44: #{tpu_custom_call.1} parent=1 // pred_region
      %697 = dma.done [#allocation4], 128
    $region45: #{tpu_custom_call.1} parent=1 // pred_fallthru
      _
    %698 = vsyncpa [#allocation3], 1
    %699 = vsyncpa [#allocation8], 1
    %700 = vsyncpa [#allocation4], 1
    %701 = vsyncpa [#allocation5], 1

</llo_original>
